<compile_context>
chip_gen: v5e
topology: v5e:2x2
jax: 0.10.0
libtpu: 0.0.40
codegen_flags: <defaults>
</compile_context>

<pallas_src>
import functools

import jax
import jax.numpy as jnp
from jax.experimental import pallas as pl
from jax.experimental.pallas import tpu as pltpu

MARGIN = 0.25
GAMMA = 256.0
O_P = 1.0 + MARGIN
O_N = -MARGIN
DELTA_P = 1.0 - MARGIN
DELTA_N = MARGIN


def circle_loss_kernel(labels_ref, cos_ref, out_ref, *, tile_c):
    # labels_ref: (tile_n, 1) int32 in VMEM
    # cos_ref / out_ref: (tile_n, tile_c) in VMEM
    cos = jnp.clip(cos_ref[...].astype(jnp.float32), -1.0, 1.0)

    tn, tc = cos.shape
    col_base = pl.program_id(1) * tile_c          # 0 when the C axis is un-tiled
    col_ids = jax.lax.broadcasted_iota(jnp.int32, (tn, tc), 1) + col_base

    labels = labels_ref[...]                      # (tn, 1) int32
    pos_mask = (col_ids == labels) & (labels != -1)

    alpha_p = jnp.maximum(O_P - cos, 0.0)
    alpha_n = jnp.maximum(cos - O_N, 0.0)
    logit_p = alpha_p * (cos - DELTA_P)
    logit_n = alpha_n * (cos - DELTA_N)

    out_ref[...] = (GAMMA * jnp.where(pos_mask, logit_p, logit_n)).astype(out_ref.dtype)


def _choose_tiles(n, c, itemsize, budget_bytes=3 << 20):
    """Pick (tile_n, tile_c): lane-dense, multi-MiB blocks, but small enough that
    2 in-blocks + 2 out-blocks fit the smallest scoped-VMEM default (v5e 16 MiB)."""
    # Prefer blocking the full class axis (single DMA per row-block, unmasked stores).
    if c * 8 * itemsize <= budget_bytes:
        tile_c = c
    else:
        # Fall back to the largest multiple-of-128 divisor of C that fits with 8 rows.
        tile_c = 128
        for cand in range(c - (c % 128), 127, -128):
            if c % cand == 0 and cand * 8 * itemsize <= budget_bytes:
                tile_c = cand
                break
    # Largest multiple-of-8 divisor of N whose block fits the budget; prefer leaving
    # >= 2 row steps so both v7x TensorCores get work.
    cands = [d for d in range(8, n + 1, 8)
             if n % d == 0 and d * tile_c * itemsize <= budget_bytes]
    if cands:
        pref = [d for d in cands if n // d >= 2]
        tile_n = max(pref) if pref else max(cands)
    else:
        tile_n = n  # full-N block is always a legal block shape
    return tile_n, tile_c


def circle_loss(cos_theta: jax.Array, labels: jax.Array) -> jax.Array:
    """cos_theta: [N, C] float, labels: [N] int (-1 = invalid sample)."""
    n, c = cos_theta.shape
    itemsize = jnp.dtype(cos_theta.dtype).itemsize
    tile_n, tile_c = _choose_tiles(n, c, itemsize)
    assert n % tile_n == 0 and c % tile_c == 0

    labels2d = labels.astype(jnp.int32).reshape(n, 1)
    grid = (n // tile_n, c // tile_c)
    kernel = functools.partial(circle_loss_kernel, tile_c=tile_c)

    return pl.pallas_call(
        kernel,
        out_shape=jax.ShapeDtypeStruct((n, c), cos_theta.dtype),
        grid_spec=pltpu.PrefetchScalarGridSpec(
            num_scalar_prefetch=0,
            grid=grid,
            in_specs=[
                # labels: constant block index along j -> DMA'd once per row block.
                pl.BlockSpec((tile_n, 1), lambda i, j: (i, 0)),
                pl.BlockSpec((tile_n, tile_c), lambda i, j: (i, j)),
            ],
            out_specs=pl.BlockSpec((tile_n, tile_c), lambda i, j: (i, j)),
        ),
        compiler_params=pltpu.CompilerParams(
            dimension_semantics=("parallel", "parallel")),
    )(labels2d, cos_theta)


def circle_loss_ref(cos_theta, labels):
    """Pure-JAX reference mirroring the PyTorch forward."""
    cos = jnp.clip(cos_theta.astype(jnp.float32), -1.0, 1.0)
    n, c = cos.shape
    col_ids = jnp.arange(c, dtype=jnp.int32)[None, :]
    lab = labels.astype(jnp.int32)[:, None]
    pos = (col_ids == lab) & (lab != -1)
    alpha_p = jnp.maximum(O_P - cos, 0.0)
    alpha_n = jnp.maximum(cos - O_N, 0.0)
    logit_p = alpha_p * (cos - DELTA_P)
    logit_n = alpha_n * (cos - DELTA_N)
    return (GAMMA * jnp.where(pos, logit_p, logit_n)).astype(cos_theta.dtype)


if __name__ == "__main__":
    key = jax.random.PRNGKey(0)
    k1, k2 = jax.random.split(key)

    # Small demo shapes: 64 samples, 256 classes.  _choose_tiles picks a
    # full-C-wide block with >= 2 row steps (tile_n=32, tile_c=256 here).
    N, C = 64, 256
    cos_theta = jax.random.uniform(k1, (N, C), jnp.float32, -1.2, 1.2)
    labels = jax.random.randint(k2, (N,), 0, C, dtype=jnp.int32)
    labels = labels.at[3].set(-1)   # invalid samples (label == -1)
    labels = labels.at[17].set(-1)

    out = circle_loss(cos_theta, labels)
    out = jax.block_until_ready(out)

    ref = circle_loss_ref(cos_theta, labels)
    assert out.shape == (N, C) and out.dtype == jnp.float32
    assert jnp.allclose(out, ref, atol=1e-5, rtol=1e-5), "mismatch vs reference"
    print("KERNEL_OK")
</pallas_src>

<mosaic_0001>
module attributes {stable_mosaic.version = 11 : i64} {
  func.func @circle_loss_kernel(%arg0: i32, %arg1: i32, %arg2: memref<32x1xi32, #tpu.memory_space<vmem>>, %arg3: memref<32x256xf32, #tpu.memory_space<vmem>>, %arg4: memref<32x256xf32, #tpu.memory_space<vmem>>) attributes {dimension_semantics = [#tpu.dimension_semantics<parallel>, #tpu.dimension_semantics<parallel>], iteration_bounds = array<i64: 2, 1>, scalar_prefetch = 0 : i64, scratch_operands = 0 : i64, tpu.core_type = #tpu.core_type<tc>, window_params = [{transform_indices = @transform_0, window_bounds = array<i64: 32, 1>}, {transform_indices = @transform_1, window_bounds = array<i64: 32, 256>}, {transform_indices = @transform_2, window_bounds = array<i64: 32, 256>}]} {
    %c0 = arith.constant 0 : index
    %c0_0 = arith.constant 0 : index
    %0 = vector.load %arg3[%c0, %c0_0] : memref<32x256xf32, #tpu.memory_space<vmem>>, vector<32x256xf32>
    %cst = arith.constant -1.000000e+00 : f32
    %cst_1 = arith.constant 1.000000e+00 : f32
    %1 = vector.broadcast %cst : f32 to vector<32x256xf32>
    %2 = arith.maximumf %1, %0 : vector<32x256xf32>
    %3 = vector.broadcast %cst_1 : f32 to vector<32x256xf32>
    %4 = arith.minimumf %3, %2 : vector<32x256xf32>
    %c256_i32 = arith.constant 256 : i32
    %5 = arith.muli %arg1, %c256_i32 : i32
    %6 = tpu.iota {dimensions = array<i32: 1>} : vector<32x256xi32>
    %7 = vector.broadcast %5 : i32 to vector<32x256xi32>
    %8 = arith.addi %6, %7 : vector<32x256xi32>
    %c0_2 = arith.constant 0 : index
    %c0_3 = arith.constant 0 : index
    %9 = vector.load %arg2[%c0_2, %c0_3] : memref<32x1xi32, #tpu.memory_space<vmem>>, vector<32x1xi32>
    %10 = vector.broadcast %9 : vector<32x1xi32> to vector<32x256xi32>
    %11 = arith.cmpi eq, %8, %10 : vector<32x256xi32>
    %c-1_i32 = arith.constant -1 : i32
    %12 = vector.broadcast %c-1_i32 : i32 to vector<32x1xi32>
    %13 = arith.cmpi ne, %9, %12 : vector<32x1xi32>
    %14 = vector.broadcast %13 : vector<32x1xi1> to vector<32x256xi1>
    %15 = arith.andi %11, %14 : vector<32x256xi1>
    %cst_4 = arith.constant 1.250000e+00 : f32
    %16 = vector.broadcast %cst_4 : f32 to vector<32x256xf32>
    %17 = arith.subf %16, %4 : vector<32x256xf32>
    %cst_5 = arith.constant 0.000000e+00 : f32
    %18 = vector.broadcast %cst_5 : f32 to vector<32x256xf32>
    %19 = arith.maximumf %17, %18 : vector<32x256xf32>
    %cst_6 = arith.constant -2.500000e-01 : f32
    %20 = vector.broadcast %cst_6 : f32 to vector<32x256xf32>
    %21 = arith.subf %4, %20 : vector<32x256xf32>
    %cst_7 = arith.constant 0.000000e+00 : f32
    %22 = vector.broadcast %cst_7 : f32 to vector<32x256xf32>
    %23 = arith.maximumf %21, %22 : vector<32x256xf32>
    %cst_8 = arith.constant 7.500000e-01 : f32
    %24 = vector.broadcast %cst_8 : f32 to vector<32x256xf32>
    %25 = arith.subf %4, %24 : vector<32x256xf32>
    %26 = arith.mulf %19, %25 : vector<32x256xf32>
    %cst_9 = arith.constant 2.500000e-01 : f32
    %27 = vector.broadcast %cst_9 : f32 to vector<32x256xf32>
    %28 = arith.subf %4, %27 : vector<32x256xf32>
    %29 = arith.mulf %23, %28 : vector<32x256xf32>
    %30 = arith.select %15, %26, %29 : vector<32x256xi1>, vector<32x256xf32>
    %cst_10 = arith.constant 2.560000e+02 : f32
    %31 = vector.broadcast %cst_10 : f32 to vector<32x256xf32>
    %32 = arith.mulf %31, %30 : vector<32x256xf32>
    %c0_11 = arith.constant 0 : index
    %c0_12 = arith.constant 0 : index
    %33 = vector.load %arg4[%c0_11, %c0_12] : memref<32x256xf32, #tpu.memory_space<vmem>>, vector<32x256xf32>
    tpu.vector_store %arg4[%c0_11, %c0_12], %32 {strides = array<i32>} : memref<32x256xf32, #tpu.memory_space<vmem>>, vector<32x256xf32>,
    return
  }
  func.func @transform_0(%arg0: i32, %arg1: i32) -> (i32, i32) {
    %c0_i32 = arith.constant 0 : i32
    %c0_i32_0 = arith.constant 0 : i32
    return %arg0, %c0_i32 : i32, i32
  }
  func.func @transform_1(%arg0: i32, %arg1: i32) -> (i32, i32) {
    %c0_i32 = arith.constant 0 : i32
    return %arg0, %arg1 : i32, i32
  }
  func.func @transform_2(%arg0: i32, %arg1: i32) -> (i32, i32) {
    %c0_i32 = arith.constant 0 : i32
    return %arg0, %arg1 : i32, i32
  }
}

</mosaic_0001>

<llo_original>
// kernel: tpu_custom_call.1
$region0: #{tpu_custom_call.1}
  #allocation0 [shape = 'u32[]', space=smem, size = 0x4, offset = 0x4, fixed_abs, tag = 'smem constant byte address 0x4 - core index']
  #allocation1 [shape = 'u32[72,128]{1,0:T(1,128)}', space=vmem, size = 0x9000, scoped, tag = 'internal scratch']
  %s0 = inlined_call_operand.vmem [shape: s32[64,1], index: 0, kind: input, shape index: {}]
  %s1 = inlined_call_operand.hbm [shape: f32[64,256], index: 1, kind: input, shape index: {}]
  %s2 = inlined_call_operand.hbm [shape: f32[64,256], index: 2, kind: output, shape index: {}]
  %s3 = sld [smem:[#allocation0]]
  $region45: #{tpu_custom_call.1} parent=0
    _
  %s5 = ssub.s32 1, %s3
  %s6 = scalar_select 0, %s5, %s3
  $region1: #{tpu_custom_call.1} parent=0
    #allocation2 [shape = 'u8[65536]{0}', space=vmem, size = 0x10000, scoped, tag = 'input window, operand 1']
    #allocation3 [shape = 's32[2]{0}', space=sflag, size = 0x8, scoped, tag = 'scoped memory for tpu_custom_call.1']
    #allocation4 [shape = 's32[2]{0}', space=sflag, size = 0x8, scoped, tag = 'scoped memory for tpu_custom_call.1']
    #allocation5 [shape = 'u8[65536]{0}', space=vmem, size = 0x10000, scoped, tag = 'output window, operand 0']
    %7 = vsyncpa [#allocation3], 0
    %s8 = scalar_lea.sflag [#allocation3], 1
    %9 = vsyncpa %s8, 0
    %10 = vsyncpa [#allocation4], 0
    %s11 = scalar_lea.sflag [#allocation4], 1
    %12 = vsyncpa %s11, 0
    loop: start=0, step=1, limit=4
    $region2: #{tpu_custom_call.1} parent=1 // loop_pre_header
      _
    $region3: #{tpu_custom_call.1} parent=1 // loop_header
      %s14 = sphi 0, %s18
      %p15 = scmp.ge.s32.totalorder %s14, 4
      %s21 = sphi 0, %s33
      %s22 = sphi 0, %s29
      %s23 = sphi 0, %s21
      %s24 = sphi 0, %s22
      %s25 = sphi 0, %s23
      %s26 = sphi 0, %s24
      %s36 = sphi 0, %s38
      %s39 = sphi 0, %s36
      %s40 = sphi 0, %s39
      %s56 = sphi 0, %s40
      %s64 = sphi 0, %s66
      %s67 = sphi 0, %s64
      %s68 = sphi 0, %s67
      %s84 = sphi 0, %s68
      %s92 = sphi 0, %s94
      %s95 = sphi 0, %s92
      %s96 = sphi 0, %s95
      %s112 = sphi 0, %s96
    $region4: #{tpu_custom_call.1} parent=1 // loop_header_branch
      %17 = sbr.rel (%p15) target = $region8
    $region5: #{tpu_custom_call.1} parent=1 // loop_body
      %s19 = ssub.s32 %s14, 1
      %s20 = ssub.s32 %s14, 2
      %s27 = sadd.s32 1, %s22
      %p28 = scmp.ge.s32.totalorder %s27, 1
      %s29 = scalar_select %p28, 0, %s27
      %s30 = sadd.s32 1, %s21
      %s31 = scalar_select %p28, %s30, %s21
      %p32 = scmp.ge.s32.totalorder %s31, 2
      %s33 = scalar_select %p32, 0, %s31
      %s34 = ssub.s32 %s21, %s33
      %p35 = scmp.eq.s32.totalorder %s34, 0
      %s37 = sadd.s32 %s36, 1
      %s38 = scalar_select %p35, %s36, %s37
      %p41 = pneg %p35
      %p42 = scmp.eq.s32.totalorder %s14, 1
      %p43 = por %p41, %p42
      %p44 = scmp.ne.s32.totalorder %s36, %s39
      %p45 = scmp.eq.s32.totalorder %s14, 0
      %p46 = por %p44, %p45
      %p47 = scmp.ne.s32.totalorder %s36, %s39
      %p48 = scmp.eq.s32.totalorder %s19, 1
      %p49 = por %p47, %p48
      %p50 = scmp.ne.s32.totalorder %s39, %s40
      %p51 = scmp.eq.s32.totalorder %s19, 0
      %p52 = por %p50, %p51
      %p53 = scmp.ne.s32.totalorder %s39, %s40
      %p54 = scmp.eq.s32.totalorder %s20, 1
      %p55 = por %p53, %p54
      %p57 = scmp.ne.s32.totalorder %s40, %s56
      %p58 = scmp.eq.s32.totalorder %s20, 0
      %p59 = por %p57, %p58
      %s60 = ssub.s32 %s21, %s33
      %s61 = ssub.s32 %s22, %s29
      %s62 = sor.u32 %s60, %s61
      %p63 = scmp.eq.s32.totalorder %s62, 0
      %s65 = sadd.s32 %s64, 1
      %s66 = scalar_select %p63, %s64, %s65
      %p69 = pneg %p63
      %p70 = scmp.eq.s32.totalorder %s14, 1
      %p71 = por %p69, %p70
      %p72 = scmp.ne.s32.totalorder %s64, %s67
      %p73 = scmp.eq.s32.totalorder %s14, 0
      %p74 = por %p72, %p73
      %p75 = scmp.ne.s32.totalorder %s64, %s67
      %p76 = scmp.eq.s32.totalorder %s19, 1
      %p77 = por %p75, %p76
      %p78 = scmp.ne.s32.totalorder %s67, %s68
      %p79 = scmp.eq.s32.totalorder %s19, 0
      %p80 = por %p78, %p79
      %p81 = scmp.ne.s32.totalorder %s67, %s68
      %p82 = scmp.eq.s32.totalorder %s20, 1
      %p83 = por %p81, %p82
      %p85 = scmp.ne.s32.totalorder %s68, %s84
      %p86 = scmp.eq.s32.totalorder %s20, 0
      %p87 = por %p85, %p86
      %s88 = ssub.s32 %s21, %s33
      %s89 = ssub.s32 %s22, %s29
      %s90 = sor.u32 %s88, %s89
      %p91 = scmp.eq.s32.totalorder %s90, 0
      %s93 = sadd.s32 %s92, 1
      %s94 = scalar_select %p91, %s92, %s93
      %p97 = pneg %p91
      %p98 = scmp.eq.s32.totalorder %s14, 1
      %p99 = por %p97, %p98
      %p100 = scmp.ne.s32.totalorder %s92, %s95
      %p101 = scmp.eq.s32.totalorder %s14, 0
      %p102 = por %p100, %p101
      %p103 = scmp.ne.s32.totalorder %s92, %s95
      %p104 = scmp.eq.s32.totalorder %s19, 1
      %p105 = por %p103, %p104
      %p106 = scmp.ne.s32.totalorder %s95, %s96
      %p107 = scmp.eq.s32.totalorder %s19, 0
      %p108 = por %p106, %p107
      %p109 = scmp.ne.s32.totalorder %s95, %s96
      %p110 = scmp.eq.s32.totalorder %s20, 1
      %p111 = por %p109, %p110
      %p113 = scmp.ne.s32.totalorder %s96, %s112
      %p114 = scmp.eq.s32.totalorder %s20, 0
      %p115 = por %p113, %p114
      %p116 = scmp.le.s32.totalorder 1, %s14
      %p117 = scmp.lt.s32.totalorder %s14, 3
      %p118 = pnand %p116, %p117
      %p119 = pneg %p118
      // Predicated region
      $region9: #{tpu_custom_call.1} parent=5 // pred_check
        _
      $region10: #{tpu_custom_call.1} parent=5 // pred_check_branch
        %121 = sbr.rel (%p118) target = $region12
      $region11: #{tpu_custom_call.1} parent=5 // pred_region
        %s122 = ssub.s32 %s14, 1
      $region12: #{tpu_custom_call.1} parent=5 // pred_fallthru
        _
      %p123 = scmp.lt.s32.totalorder %s14, 2
      // Predicated region
      $region13: #{tpu_custom_call.1} parent=5 // pred_check
        %p124 = pneg %p123
      $region14: #{tpu_custom_call.1} parent=5 // pred_check_branch
        %126 = sbr.rel (%p124) target = $region16
      $region15: #{tpu_custom_call.1} parent=5 // pred_region
        // Predicated region
        $region17: #{tpu_custom_call.1} parent=15 // pred_check
          %p127 = pneg %p46
        $region18: #{tpu_custom_call.1} parent=15 // pred_check_branch
          %129 = sbr.rel (%p127) target = $region20
        $region19: #{tpu_custom_call.1} parent=15 // pred_region
          %s130 = smul.u32 4, %s21
          %p131 = scmp.lt.s32.totalorder %s130, 7
          %s132 = scalar_select %p131, %s130, 7
          %s133 = smul.addr %s132, 8
          %s134 = scalar_lea.vmem %s0, %s133
          %s135 = smul.u32 4, %s21
        $region20: #{tpu_custom_call.1} parent=15 // pred_fallthru
          _
        // Predicated region
        $region21: #{tpu_custom_call.1} parent=15 // pred_check
          %p136 = pneg %p74
        $region22: #{tpu_custom_call.1} parent=15 // pred_check_branch
          %138 = sbr.rel (%p136) target = $region24
        $region23: #{tpu_custom_call.1} parent=15 // pred_region
          %s139 = sand.u32 %s64, 1
          %s140 = scalar_lea.sflag [#allocation3], %s139
          %s141 = sand.u32 %s64, 1
          %s142 = smul.addr %s141, 64
          %s143 = scalar_lea.vmem [#allocation2], %s142
          %s144 = smul.u32 4, %s21
          %s145 = smul.u32 2, %s22
          %147 = vsyncadd %s140, 0
          %s148 = smul.addr %s144, 2
          %s149 = sadd.s32 %s145, %s148
          %s150 = smul.addr %s149, 8
          %s151 = scalar_lea.hbm %s1, %s150
          %s152 = sshll.u32 %s151, 4
          %s153 = int_to_ptr.hbm [resolvable:$true] %s152
          %s154 = sshll.u32 %s143, 4
          %s155 = int_to_ptr.vmem [resolvable:$true] %s154
          %160 = dma.hbm_to_vmem [thread:$0]  %s153, 1024, %s155, %s140, 256, 256, 16
        $region24: #{tpu_custom_call.1} parent=15 // pred_fallthru
          _
      $region16: #{tpu_custom_call.1} parent=5 // pred_fallthru
        _
      %p161 = scmp.le.s32.totalorder 1, %s14
      %p162 = scmp.lt.s32.totalorder %s14, 3
      %p163 = pnand %p161, %p162
      %p164 = pneg %p163
      // Predicated region
      $region25: #{tpu_custom_call.1} parent=5 // pred_check
        _
      $region26: #{tpu_custom_call.1} parent=5 // pred_check_branch
        %166 = sbr.rel (%p163) target = $region28
      $region27: #{tpu_custom_call.1} parent=5 // pred_region
        %s167 = ssub.s32 %s14, 1
        %s168 = sand.u32 %s67, 1
        %s169 = scalar_lea.sflag [#allocation3], %s168
        %s170 = sand.u32 %s67, 1
        %s171 = smul.addr %s170, 64
        %s172 = scalar_lea.vmem [#allocation2], %s171
        // Predicated region
        $region29: #{tpu_custom_call.1} parent=27 // pred_check
          %p173 = pneg %p80
        $region30: #{tpu_custom_call.1} parent=27 // pred_check_branch
          %175 = sbr.rel (%p173) target = $region32
        $region31: #{tpu_custom_call.1} parent=27 // pred_region
          %177 = dma.done %s169, 1024
        $region32: #{tpu_custom_call.1} parent=27 // pred_fallthru
          _
        %s178 = smul.u32 4, %s23
        %p179 = scmp.lt.s32.totalorder %s178, 7
        %s180 = scalar_select %p179, %s178, 7
        %s181 = smul.addr %s180, 8
        %s182 = scalar_lea.vmem %s0, %s181
        %p183 = pneg %p52
        %p184 = pneg %p49
        %s185 = sand.u32 %s67, 1
        %s186 = scalar_lea.sflag [#allocation3], %s185
        %s187 = sand.u32 %s67, 1
        %s188 = smul.addr %s187, 64
        %s189 = scalar_lea.vmem [#allocation2], %s188
        %p190 = pneg %p80
        %p191 = pneg %p77
        %p192 = pneg %p108
        %p193 = pneg %p105
        %s194 = sand.u32 %s95, 1
        %s195 = scalar_lea.sflag [#allocation4], %s194
        %s196 = sand.u32 %s95, 1
        %s197 = smul.addr %s196, 64
        %s198 = scalar_lea.vmem [#allocation5], %s197
        %s199 = smul.u32 4, %s23
        %p200 = scmp.lt.s32.totalorder %s199, 7
        %s201 = scalar_select %p200, %s199, 7
        %s202 = smul.addr %s201, 8
        %s203 = scalar_lea.vmem %s0, %s202
        %s204 = smul.u32 4, %s23
        %s205 = smul.u32 4, %s23
        %s206 = smul.u32 2, %s24
        %s207 = smul.u32 4, %s23
        %s208 = smul.u32 2, %s24
        %v209 = vld [vmem:[%s172] sm:$0xff]
        %v210 = vld [vmem:[%s172 + $0x8] sm:$0xff]
        %v211 = vld [vmem:[%s172 + $0x10] sm:$0xff]
        %v212 = vld [vmem:[%s172 + $0x18] sm:$0xff]
        %v213 = vld [vmem:[%s172 + $0x20] sm:$0xff]
        %v214 = vld [vmem:[%s172 + $0x28] sm:$0xff]
        %v215 = vld [vmem:[%s172 + $0x30] sm:$0xff]
        %v216 = vld [vmem:[%s172 + $0x38] sm:$0xff]
        %v217 = vmax.f32 %v209, -1.0
        %v218 = vmax.f32 %v210, -1.0
        %v219 = vmax.f32 %v211, -1.0
        %v220 = vmax.f32 %v212, -1.0
        %v221 = vmax.f32 %v213, -1.0
        %v222 = vmax.f32 %v214, -1.0
        %v223 = vmax.f32 %v215, -1.0
        %v224 = vmax.f32 %v216, -1.0
        %v225 = vmin.f32 %v217, 1.0
        %v226 = vmin.f32 %v218, 1.0
        %v227 = vmin.f32 %v219, 1.0
        %v228 = vmin.f32 %v220, 1.0
        %v229 = vmin.f32 %v221, 1.0
        %v230 = vmin.f32 %v222, 1.0
        %v231 = vmin.f32 %v223, 1.0
        %v232 = vmin.f32 %v224, 1.0
        %s233 = smul.u32 %s24, 256
        %v234 = vlaneseq
        %v235 = vand.u32 %v234, 127
        %v236 = vadd.s32 %v235, 128
        %v237 = vstv %s233
        %v238 = vadd.s32 %v235, %v237
        %v239 = vadd.s32 %v236, %v237
        %v240 = vld [vmem:[%s203] sm:$0xff]
        %v241 = vld [vmem:[%s203 + $0x8] sm:$0xff]
        %v242 = vld [vmem:[%s203 + $0x10] sm:$0xff]
        %v243 = vld [vmem:[%s203 + $0x18] sm:$0xff]
        %244 = vset.pattern.permute.xlu0 0
        %245 = vperm.xlu0 %244, %v240
        %v246 = vpop.permute.xlu0 %245
        %247 = vset.pattern.permute.xlu0 0
        %248 = vperm.xlu0 %247, %v241
        %v249 = vpop.permute.xlu0 %248
        %250 = vset.pattern.permute.xlu0 0
        %251 = vperm.xlu0 %250, %v242
        %v252 = vpop.permute.xlu0 %251
        %253 = vset.pattern.permute.xlu0 0
        %254 = vperm.xlu0 %253, %v243
        %v255 = vpop.permute.xlu0 %254
        %vm256 = vcmp.eq.s32.totalorder %v238, %v246
        %vm257 = vcmp.eq.s32.totalorder %v239, %v246
        %vm258 = vcmp.eq.s32.totalorder %v238, %v249
        %vm259 = vcmp.eq.s32.totalorder %v239, %v249
        %vm260 = vcmp.eq.s32.totalorder %v238, %v252
        %vm261 = vcmp.eq.s32.totalorder %v239, %v252
        %vm262 = vcmp.eq.s32.totalorder %v238, %v255
        %vm263 = vcmp.eq.s32.totalorder %v239, %v255
        %vm264 = vcmp.ne.s32.totalorder %v240, 4294967295
        %vm265 = vcmp.ne.s32.totalorder %v241, 4294967295
        %vm266 = vcmp.ne.s32.totalorder %v242, 4294967295
        %vm267 = vcmp.ne.s32.totalorder %v243, 4294967295
        %v268 = vsel %vm264, 1, 0
        %v269 = vsel %vm265, 1, 0
        %v270 = vsel %vm266, 1, 0
        %v271 = vsel %vm267, 1, 0
        %272 = vset.pattern.permute.xlu0 0
        %273 = vperm.xlu0 %272, %v268
        %v274 = vpop.permute.xlu0 %273
        %275 = vset.pattern.permute.xlu0 0
        %276 = vperm.xlu0 %275, %v269
        %v277 = vpop.permute.xlu0 %276
        %278 = vset.pattern.permute.xlu0 0
        %279 = vperm.xlu0 %278, %v270
        %v280 = vpop.permute.xlu0 %279
        %281 = vset.pattern.permute.xlu0 0
        %282 = vperm.xlu0 %281, %v271
        %v283 = vpop.permute.xlu0 %282
        %vm284 = vcmp.eq.s32.totalorder %v274, 1
        %vm285 = vcmp.eq.s32.totalorder %v277, 1
        %vm286 = vcmp.eq.s32.totalorder %v280, 1
        %vm287 = vcmp.eq.s32.totalorder %v283, 1
        %vm288 = vmand %vm256, %vm284
        %vm289 = vmand %vm257, %vm284
        %vm290 = vmand %vm258, %vm285
        %vm291 = vmand %vm259, %vm285
        %vm292 = vmand %vm260, %vm286
        %vm293 = vmand %vm261, %vm286
        %vm294 = vmand %vm262, %vm287
        %vm295 = vmand %vm263, %vm287
        %v296 = vsub.f32 1.25, %v225
        %v297 = vsub.f32 1.25, %v226
        %v298 = vsub.f32 1.25, %v227
        %v299 = vsub.f32 1.25, %v228
        %v300 = vsub.f32 1.25, %v229
        %v301 = vsub.f32 1.25, %v230
        %v302 = vsub.f32 1.25, %v231
        %v303 = vsub.f32 1.25, %v232
        %v304 = vmax.f32 %v296, 0.0
        %v305 = vmax.f32 %v297, 0.0
        %v306 = vmax.f32 %v298, 0.0
        %v307 = vmax.f32 %v299, 0.0
        %v308 = vmax.f32 %v300, 0.0
        %v309 = vmax.f32 %v301, 0.0
        %v310 = vmax.f32 %v302, 0.0
        %v311 = vmax.f32 %v303, 0.0
        %v312 = vsub.f32 %v225, -0.25
        %v313 = vsub.f32 %v226, -0.25
        %v314 = vsub.f32 %v227, -0.25
        %v315 = vsub.f32 %v228, -0.25
        %v316 = vsub.f32 %v229, -0.25
        %v317 = vsub.f32 %v230, -0.25
        %v318 = vsub.f32 %v231, -0.25
        %v319 = vsub.f32 %v232, -0.25
        %v320 = vmax.f32 %v312, 0.0
        %v321 = vmax.f32 %v313, 0.0
        %v322 = vmax.f32 %v314, 0.0
        %v323 = vmax.f32 %v315, 0.0
        %v324 = vmax.f32 %v316, 0.0
        %v325 = vmax.f32 %v317, 0.0
        %v326 = vmax.f32 %v318, 0.0
        %v327 = vmax.f32 %v319, 0.0
        %v328 = vsub.f32 %v225, 0.75
        %v329 = vsub.f32 %v226, 0.75
        %v330 = vsub.f32 %v227, 0.75
        %v331 = vsub.f32 %v228, 0.75
        %v332 = vsub.f32 %v229, 0.75
        %v333 = vsub.f32 %v230, 0.75
        %v334 = vsub.f32 %v231, 0.75
        %v335 = vsub.f32 %v232, 0.75
        %v336 = vmul.f32 %v304, %v328
        %v337 = vmul.f32 %v305, %v329
        %v338 = vmul.f32 %v306, %v330
        %v339 = vmul.f32 %v307, %v331
        %v340 = vmul.f32 %v308, %v332
        %v341 = vmul.f32 %v309, %v333
        %v342 = vmul.f32 %v310, %v334
        %v343 = vmul.f32 %v311, %v335
        %v344 = vsub.f32 %v225, 0.25
        %v345 = vsub.f32 %v226, 0.25
        %v346 = vsub.f32 %v227, 0.25
        %v347 = vsub.f32 %v228, 0.25
        %v348 = vsub.f32 %v229, 0.25
        %v349 = vsub.f32 %v230, 0.25
        %v350 = vsub.f32 %v231, 0.25
        %v351 = vsub.f32 %v232, 0.25
        %v352 = vmul.f32 %v320, %v344
        %v353 = vmul.f32 %v321, %v345
        %v354 = vmul.f32 %v322, %v346
        %v355 = vmul.f32 %v323, %v347
        %v356 = vmul.f32 %v324, %v348
        %v357 = vmul.f32 %v325, %v349
        %v358 = vmul.f32 %v326, %v350
        %v359 = vmul.f32 %v327, %v351
        %v360 = vsel %vm288, %v336, %v352
        %v361 = vsel %vm289, %v337, %v353
        %v362 = vsel %vm290, %v338, %v354
        %v363 = vsel %vm291, %v339, %v355
        %v364 = vsel %vm292, %v340, %v356
        %v365 = vsel %vm293, %v341, %v357
        %v366 = vsel %vm294, %v342, %v358
        %v367 = vsel %vm295, %v343, %v359
        %v368 = vmul.f32 %v360, 256.0
        %v369 = vmul.f32 %v361, 256.0
        %v370 = vmul.f32 %v362, 256.0
        %v371 = vmul.f32 %v363, 256.0
        %v372 = vmul.f32 %v364, 256.0
        %v373 = vmul.f32 %v365, 256.0
        %v374 = vmul.f32 %v366, 256.0
        %v375 = vmul.f32 %v367, 256.0
        %376 = vst [vmem:[%s198] sm:$0xff] %v368
        %377 = vst [vmem:[%s198 + $0x8] sm:$0xff] %v369
        %378 = vst [vmem:[%s198 + $0x10] sm:$0xff] %v370
        %379 = vst [vmem:[%s198 + $0x18] sm:$0xff] %v371
        %380 = vst [vmem:[%s198 + $0x20] sm:$0xff] %v372
        %381 = vst [vmem:[%s198 + $0x28] sm:$0xff] %v373
        %382 = vst [vmem:[%s198 + $0x30] sm:$0xff] %v374
        %383 = vst [vmem:[%s198 + $0x38] sm:$0xff] %v375
        %s384 = sand.u32 %s95, 1
        %s385 = scalar_lea.sflag [#allocation4], %s384
        %s386 = sand.u32 %s95, 1
        %s387 = smul.addr %s386, 64
        %s388 = scalar_lea.vmem [#allocation5], %s387
        // Predicated region
        $region33: #{tpu_custom_call.1} parent=27 // pred_check
          %p389 = pneg %p105
        $region34: #{tpu_custom_call.1} parent=27 // pred_check_branch
          %391 = sbr.rel (%p389) target = $region36
        $region35: #{tpu_custom_call.1} parent=27 // pred_region
          %s392 = smul.u32 4, %s23
          %s393 = smul.u32 2, %s24
          %395 = vsyncadd %s385, 0
          %s396 = smul.addr %s392, 2
          %s397 = sadd.s32 %s393, %s396
          %s398 = smul.addr %s397, 8
          %s399 = scalar_lea.hbm %s2, %s398
          %s400 = sshll.u32 %s388, 4
          %s401 = int_to_ptr.vmem [resolvable:$true] %s400
          %s402 = sshll.u32 %s399, 4
          %s403 = int_to_ptr.hbm [resolvable:$true] %s402
          %408 = dma.vmem_to_hbm [thread:$0]  %s401, 1024, %s403, %s385, 256, 256, 16
        $region36: #{tpu_custom_call.1} parent=27 // pred_fallthru
          _
      $region28: #{tpu_custom_call.1} parent=5 // pred_fallthru
        _
      %p409 = scmp.le.s32.totalorder 2, %s14
      // Predicated region
      $region37: #{tpu_custom_call.1} parent=5 // pred_check
        %p410 = pneg %p409
      $region38: #{tpu_custom_call.1} parent=5 // pred_check_branch
        %412 = sbr.rel (%p410) target = $region40
      $region39: #{tpu_custom_call.1} parent=5 // pred_region
        %s413 = ssub.s32 %s14, 2
        // Predicated region
        $region41: #{tpu_custom_call.1} parent=39 // pred_check
          %p414 = pneg %p111
        $region42: #{tpu_custom_call.1} parent=39 // pred_check_branch
          %416 = sbr.rel (%p414) target = $region44
        $region43: #{tpu_custom_call.1} parent=39 // pred_region
          %s417 = sand.u32 %s96, 1
          %s418 = scalar_lea.sflag [#allocation4], %s417
          %s419 = sand.u32 %s96, 1
          %s420 = smul.addr %s419, 64
          %s421 = scalar_lea.vmem [#allocation5], %s420
          %423 = dma.done %s418, 1024
        $region44: #{tpu_custom_call.1} parent=39 // pred_fallthru
          _
      $region40: #{tpu_custom_call.1} parent=5 // pred_fallthru
        _
    $region6: #{tpu_custom_call.1} parent=1 // loop_footer
      %s18 = sadd.s32 1, %s14
    $region7: #{tpu_custom_call.1} parent=1 // loop_footer_branch
      %13 = sbr.rel target = $region3
    $region8: #{tpu_custom_call.1} parent=1 // loop_exit
      _
    %424 = vsyncpa [#allocation3], 1
    %s425 = scalar_lea.sflag [#allocation3], 1
    %426 = vsyncpa %s425, 1
    %427 = vsyncpa [#allocation4], 1
    %s428 = scalar_lea.sflag [#allocation4], 1
    %429 = vsyncpa %s428, 1

</llo_original>
